<compile_context>
chip_gen: v7x
topology: tpu7x:2x2x1
jax: 0.10.0
libtpu: 0.0.40
codegen_flags: <defaults>
</compile_context>

<pallas_src>
import functools

import jax
import jax.numpy as jnp
from jax import lax
from jax.experimental import pallas as pl
from jax.experimental.pallas import tpu as pltpu


def _round_up(x: int, m: int) -> int:
    return ((x + m - 1) // m) * m


def _row_encoder_kernel(
    x_cat_ref,   # [TB, n_cat]        int32  (category ids)
    x_num_ref,   # [TB, n_num]        f32    (raw numerical values)
    t_ref,       # [K_cat_pad, O_pad] f32    (fused categorical tables, stacked)
    m_ref,       # [n_num, O_pad]     f32    (fused numerical weights, 1/std folded)
    b_ref,       # [1, O_pad]         f32    (fused bias)
    out_ref,     # [TB, O_pad]        f32
    *, n_cat, vocab,
):
    tb = out_ref.shape[0]
    k_cat = t_ref.shape[0]

    # --- categorical: one-hot over the stacked (column, vocab) axis ----------
    # Each column j targets its own disjoint lane block [j*V, (j+1)*V), so the
    # per-column compares can simply be summed.  Single hoisted iota.
    ids = x_cat_ref[...]                                             # [TB, n_cat]
    iota = lax.broadcasted_iota(jnp.int32, (tb, k_cat), 1)           # hoisted
    onehot = jnp.zeros((tb, k_cat), jnp.float32)
    for j in range(n_cat):
        onehot = onehot + (iota == (ids[:, j:j + 1] + j * vocab)).astype(
            jnp.float32)

    acc = jnp.dot(onehot, t_ref[...], preferred_element_type=jnp.float32)

    # --- numerical: single matmul against fused, std-scaled weights ----------
    acc = acc + jnp.dot(x_num_ref[...], m_ref[...],
                        preferred_element_type=jnp.float32)

    out_ref[...] = (acc + b_ref[...]).astype(out_ref.dtype)


def linear_row_encoder(x_cat, x_num, params, *, tb=128):
    B, n_cat = x_cat.shape
    n_num = x_num.shape[1]
    vocab, C = params["emb"].shape[1], params["emb"].shape[2]
    O = params["lin_b"].shape[0]
    assert n_cat > 0 and n_num > 0

    hi = jax.lax.Precision.HIGHEST

    # ---- parameter-only algebraic fusion (batch-independent) ----------------
    # PyTorch Linear weight is [O, N*C]; reshape to per-column [N, C, O] slabs.
    lw = params["lin_w"].T.reshape(n_cat + n_num, C, O).astype(jnp.float32)
    lw_cat, lw_num = lw[:n_cat], lw[n_cat:]

    # T[j] = emb[j] @ lw_cat[j]                      -> [n_cat, V, O]
    t_tab = jnp.einsum("jvc,jco->jvo", params["emb"], lw_cat,
                       precision=hi).reshape(n_cat * vocab, O)
    # M[j] = w_num[j] @ lw_num[j]                    -> [n_num, O]
    m_tab = jnp.einsum("jc,jco->jo", params["w_num"], lw_num, precision=hi)
    std = params["std"].astype(jnp.float32)
    mean = params["mean"].astype(jnp.float32)
    m_scaled = m_tab / std[:, None]
    bias = (params["lin_b"].astype(jnp.float32)
            + jnp.einsum("jc,jco->o", params["b_num"], lw_num, precision=hi)
            - jnp.einsum("j,jo->o", mean / std, m_tab, precision=hi))

    # ---- pad to TPU-friendly shapes -----------------------------------------
    o_pad = _round_up(O, 128)                 # lane-dense output / acc
    k_cat = _round_up(n_cat * vocab, 128)     # full-vreg categorical contraction
    t_pad = jnp.zeros((k_cat, o_pad), jnp.float32).at[:n_cat * vocab, :O].set(t_tab)
    m_pad = jnp.zeros((n_num, o_pad), jnp.float32).at[:, :O].set(m_scaled)
    b_pad = jnp.zeros((1, o_pad), jnp.float32).at[0, :O].set(bias)

    # ---- batch tiling ---------------------------------------------------------
    TB = tb if B >= tb else _round_up(B, 8)
    b_full = _round_up(B, TB)
    x_cat_p = jnp.zeros((b_full, n_cat), jnp.int32).at[:B].set(
        x_cat.astype(jnp.int32))
    x_num_p = jnp.zeros((b_full, n_num), jnp.float32).at[:B].set(
        x_num.astype(jnp.float32))

    kernel = functools.partial(_row_encoder_kernel, n_cat=n_cat, vocab=vocab)

    out = pl.pallas_call(
        kernel,
        out_shape=jax.ShapeDtypeStruct((b_full, o_pad), jnp.float32),
        grid_spec=pltpu.PrefetchScalarGridSpec(
            num_scalar_prefetch=0,
            grid=(b_full // TB,),
            in_specs=[
                pl.BlockSpec((TB, n_cat), lambda i: (i, 0)),      # streamed
                pl.BlockSpec((TB, n_num), lambda i: (i, 0)),      # streamed
                pl.BlockSpec((k_cat, o_pad), lambda i: (0, 0)),   # resident
                pl.BlockSpec((n_num, o_pad), lambda i: (0, 0)),   # resident
                pl.BlockSpec((1, o_pad), lambda i: (0, 0)),       # resident
            ],
            out_specs=pl.BlockSpec((TB, o_pad), lambda i: (i, 0)),
        ),
        compiler_params=pltpu.CompilerParams(
            dimension_semantics=("parallel",)),   # shards B across v7x's 2 TCs
    )(x_cat_p, x_num_p, t_pad, m_pad, b_pad)

    return out[:B, :O]


def reference(x_cat, x_num, params):
    """Plain-JAX mirror of the PyTorch forward (for correctness check)."""
    B, n_cat = x_cat.shape
    emb = params["emb"]
    cat_enc = jnp.stack([emb[j][x_cat[:, j]] for j in range(n_cat)], axis=1)
    xn = (x_num - params["mean"][None, :]) / params["std"][None, :]
    num_enc = xn[:, :, None] * params["w_num"][None] + params["b_num"][None]
    enc = jnp.concatenate([cat_enc, num_enc], axis=1)        # [B, N, C]
    flat = enc.reshape(B, -1)                                 # [B, N*C]
    return jnp.dot(flat, params["lin_w"].T,
                   precision=jax.lax.Precision.HIGHEST) + params["lin_b"]


if __name__ == "__main__":
    B, C, O = 32, 32, 64         # batch, channels, out_channels
    N_CAT, N_NUM, V = 3, 3, 5    # categorical cols, numerical cols, vocab size

    key = jax.random.PRNGKey(0)
    k = iter(jax.random.split(key, 10))

    params = {
        "emb":   0.1 * jax.random.normal(next(k), (N_CAT, V, C), jnp.float32),
        "w_num": 0.1 * jax.random.normal(next(k), (N_NUM, C), jnp.float32),
        "b_num": 0.1 * jax.random.normal(next(k), (N_NUM, C), jnp.float32),
        "mean":  jax.random.normal(next(k), (N_NUM,), jnp.float32),
        "std":   1.0 + jax.random.uniform(next(k), (N_NUM,), jnp.float32),
        "lin_w": 0.05 * jax.random.normal(next(k), (O, (N_CAT + N_NUM) * C),
                                          jnp.float32),
        "lin_b": 0.05 * jax.random.normal(next(k), (O,), jnp.float32),
    }

    x_cat = jax.random.randint(next(k), (B, N_CAT), 0, V, jnp.int32)
    x_num = jax.random.normal(next(k), (B, N_NUM), jnp.float32)

    # tb=16 -> grid of 2 batch tiles, exercises the pipelined B-grid.
    out = linear_row_encoder(x_cat, x_num, params, tb=16)
    jax.block_until_ready(out)

    ref = reference(x_cat, x_num, params)
    assert out.shape == (B, O)
    assert jnp.allclose(out, ref, atol=1e-4, rtol=1e-4), "mismatch vs reference"

    print("KERNEL_OK")
</pallas_src>

<mosaic_0001>
module attributes {stable_mosaic.version = 11 : i64} {
  func.func @_row_encoder_kernel(%arg0: i32, %arg1: memref<16x3xi32, #tpu.memory_space<vmem>>, %arg2: memref<16x3xf32, #tpu.memory_space<vmem>>, %arg3: memref<128x128xf32, #tpu.memory_space<vmem>>, %arg4: memref<3x128xf32, #tpu.memory_space<vmem>>, %arg5: memref<1x128xf32, #tpu.memory_space<vmem>>, %arg6: memref<16x128xf32, #tpu.memory_space<vmem>>) attributes {dimension_semantics = [#tpu.dimension_semantics<parallel>], iteration_bounds = array<i64: 2>, scalar_prefetch = 0 : i64, scratch_operands = 0 : i64, tpu.core_type = #tpu.core_type<tc>, window_params = [{transform_indices = @transform_0, window_bounds = array<i64: 16, 3>}, {transform_indices = @transform_1, window_bounds = array<i64: 16, 3>}, {pipeline_mode = #tpu.pipeline_mode<synchronous>, transform_indices = @transform_2, window_bounds = array<i64: 128, 128>}, {pipeline_mode = #tpu.pipeline_mode<synchronous>, transform_indices = @transform_3, window_bounds = array<i64: 3, 128>}, {pipeline_mode = #tpu.pipeline_mode<synchronous>, transform_indices = @transform_4, window_bounds = array<i64: 1, 128>}, {transform_indices = @transform_5, window_bounds = array<i64: 16, 128>}]} {
    %c0 = arith.constant 0 : index
    %c0_0 = arith.constant 0 : index
    %0 = vector.load %arg1[%c0, %c0_0] : memref<16x3xi32, #tpu.memory_space<vmem>>, vector<16x3xi32>
    %1 = tpu.iota {dimensions = array<i32: 1>} : vector<16x128xi32>
    %cst = arith.constant 0.000000e+00 : f32
    %2 = vector.broadcast %cst : f32 to vector<16x128xf32>
    %3 = vector.extract_strided_slice %0 {offsets = [0, 0], sizes = [16, 1], strides = [1, 1]} : vector<16x3xi32> to vector<16x1xi32>
    %c0_i32 = arith.constant 0 : i32
    %4 = vector.broadcast %c0_i32 : i32 to vector<16x1xi32>
    %5 = arith.addi %3, %4 : vector<16x1xi32>
    %6 = vector.broadcast %5 : vector<16x1xi32> to vector<16x128xi32>
    %7 = arith.cmpi eq, %1, %6 : vector<16x128xi32>
    %8 = arith.extui %7 : vector<16x128xi1> to vector<16x128xi32>
    %9 = arith.sitofp %8 : vector<16x128xi32> to vector<16x128xf32>
    %10 = arith.addf %2, %9 : vector<16x128xf32>
    %11 = vector.extract_strided_slice %0 {offsets = [0, 1], sizes = [16, 1], strides = [1, 1]} : vector<16x3xi32> to vector<16x1xi32>
    %c5_i32 = arith.constant 5 : i32
    %12 = vector.broadcast %c5_i32 : i32 to vector<16x1xi32>
    %13 = arith.addi %11, %12 : vector<16x1xi32>
    %14 = vector.broadcast %13 : vector<16x1xi32> to vector<16x128xi32>
    %15 = arith.cmpi eq, %1, %14 : vector<16x128xi32>
    %16 = arith.extui %15 : vector<16x128xi1> to vector<16x128xi32>
    %17 = arith.sitofp %16 : vector<16x128xi32> to vector<16x128xf32>
    %18 = arith.addf %10, %17 : vector<16x128xf32>
    %19 = vector.extract_strided_slice %0 {offsets = [0, 2], sizes = [16, 1], strides = [1, 1]} : vector<16x3xi32> to vector<16x1xi32>
    %c10_i32 = arith.constant 10 : i32
    %20 = vector.broadcast %c10_i32 : i32 to vector<16x1xi32>
    %21 = arith.addi %19, %20 : vector<16x1xi32>
    %22 = vector.broadcast %21 : vector<16x1xi32> to vector<16x128xi32>
    %23 = arith.cmpi eq, %1, %22 : vector<16x128xi32>
    %24 = arith.extui %23 : vector<16x128xi1> to vector<16x128xi32>
    %25 = arith.sitofp %24 : vector<16x128xi32> to vector<16x128xf32>
    %26 = arith.addf %18, %25 : vector<16x128xf32>
    %c0_1 = arith.constant 0 : index
    %c0_2 = arith.constant 0 : index
    %27 = vector.load %arg3[%c0_1, %c0_2] : memref<128x128xf32, #tpu.memory_space<vmem>>, vector<128x128xf32>
    %cst_3 = arith.constant dense<0.000000e+00> : vector<16x128xf32>
    %28 = tpu.matmul %26, %27, %cst_3 {dimension_numbers = #tpu.dot_dimension_numbers<[1], [0], [0], [1], [0, 0, 1, 1], [], []>} : vector<16x128xf32>, vector<128x128xf32>, vector<16x128xf32> -> vector<16x128xf32>
    %c0_4 = arith.constant 0 : index
    %c0_5 = arith.constant 0 : index
    %29 = vector.load %arg2[%c0_4, %c0_5] : memref<16x3xf32, #tpu.memory_space<vmem>>, vector<16x3xf32>
    %c0_6 = arith.constant 0 : index
    %c0_7 = arith.constant 0 : index
    %30 = vector.load %arg4[%c0_6, %c0_7] : memref<3x128xf32, #tpu.memory_space<vmem>>, vector<3x128xf32>
    %cst_8 = arith.constant dense<0.000000e+00> : vector<16x128xf32>
    %31 = tpu.matmul %29, %30, %cst_8 {dimension_numbers = #tpu.dot_dimension_numbers<[1], [0], [0], [1], [0, 0, 1, 1], [], []>} : vector<16x3xf32>, vector<3x128xf32>, vector<16x128xf32> -> vector<16x128xf32>
    %32 = arith.addf %28, %31 : vector<16x128xf32>
    %c0_9 = arith.constant 0 : index
    %c0_10 = arith.constant 0 : index
    %33 = vector.load %arg5[%c0_9, %c0_10] : memref<1x128xf32, #tpu.memory_space<vmem>>, vector<1x128xf32>
    %34 = vector.broadcast %33 : vector<1x128xf32> to vector<16x128xf32>
    %35 = arith.addf %32, %34 : vector<16x128xf32>
    %c0_11 = arith.constant 0 : index
    %c0_12 = arith.constant 0 : index
    %36 = vector.load %arg6[%c0_11, %c0_12] : memref<16x128xf32, #tpu.memory_space<vmem>>, vector<16x128xf32>
    tpu.vector_store %arg6[%c0_11, %c0_12], %35 {strides = array<i32>} : memref<16x128xf32, #tpu.memory_space<vmem>>, vector<16x128xf32>,
    return
  }
  func.func @transform_0(%arg0: i32) -> (i32, i32) {
    %c0_i32 = arith.constant 0 : i32
    %c0_i32_0 = arith.constant 0 : i32
    return %arg0, %c0_i32 : i32, i32
  }
  func.func @transform_1(%arg0: i32) -> (i32, i32) {
    %c0_i32 = arith.constant 0 : i32
    %c0_i32_0 = arith.constant 0 : i32
    return %arg0, %c0_i32 : i32, i32
  }
  func.func @transform_2(%arg0: i32) -> (i32, i32) {
    %c0_i32 = arith.constant 0 : i32
    %c0_i32_0 = arith.constant 0 : i32
    %c0_i32_1 = arith.constant 0 : i32
    return %c0_i32, %c0_i32_0 : i32, i32
  }
  func.func @transform_3(%arg0: i32) -> (i32, i32) {
    %c0_i32 = arith.constant 0 : i32
    %c0_i32_0 = arith.constant 0 : i32
    %c0_i32_1 = arith.constant 0 : i32
    return %c0_i32, %c0_i32_0 : i32, i32
  }
  func.func @transform_4(%arg0: i32) -> (i32, i32) {
    %c0_i32 = arith.constant 0 : i32
    %c0_i32_0 = arith.constant 0 : i32
    %c0_i32_1 = arith.constant 0 : i32
    return %c0_i32, %c0_i32_0 : i32, i32
  }
  func.func @transform_5(%arg0: i32) -> (i32, i32) {
    %c0_i32 = arith.constant 0 : i32
    %c0_i32_0 = arith.constant 0 : i32
    return %arg0, %c0_i32 : i32, i32
  }
}

</mosaic_0001>

<llo_original>
// kernel: tpu_custom_call.1
$region0: #{tpu_custom_call.1}
  #allocation0 [shape = 'u32[]', space=smem, size = 0x4, offset = 0x4, fixed_abs, tag = 'smem constant byte address 0x4 - core index']
  #allocation1 [shape = 'u32[144,128]{1,0:T(1,128)}', space=vmem, size = 0x12000, scoped, tag = 'internal scratch']
  %s0 = inlined_call_operand.vmem [shape: s32[32,3], index: 0, kind: input, shape index: {}]
  %s1 = inlined_call_operand.vmem [shape: f32[32,3], index: 1, kind: input, shape index: {}]
  %s2 = inlined_call_operand.hbm [shape: f32[128,128], index: 2, kind: input, shape index: {}]
  %s3 = inlined_call_operand.vmem [shape: f32[3,128], index: 3, kind: input, shape index: {}]
  %s4 = inlined_call_operand.vmem [shape: f32[1,128], index: 4, kind: input, shape index: {}]
  %s5 = inlined_call_operand.hbm [shape: f32[32,128], index: 5, kind: output, shape index: {}]
  %s6 = sld [smem:[#allocation0]]
  $region57: #{tpu_custom_call.1} parent=0
    _
  %s8 = ssub.s32 1, %s6
  %s9 = scalar_select 0, %s8, %s6
  $region1: #{tpu_custom_call.1} parent=0
    #allocation2 [shape = 'u8[65536]{0}', space=vmem, size = 0x10000, scoped, tag = 'input window, operand 2, single buffered']
    #allocation3 [shape = 's32[2]{0}', space=sflag, size = 0x8, scoped, tag = 'scoped memory for tpu_custom_call.1']
    #allocation4 [shape = 's32[2]{0}', space=sflag, size = 0x8, scoped, tag = 'scoped memory for tpu_custom_call.1']
    #allocation5 [shape = 'u8[16384]{0}', space=vmem, size = 0x4000, scoped, tag = 'output window, operand 0']
    %10 = vsyncpa [#allocation3], 0
    %11 = vsyncpa [#allocation4], 0
    %s12 = scalar_lea.sflag [#allocation4], 1
    %13 = vsyncpa %s12, 0
    loop: start=0, step=1, limit=4
    $region2: #{tpu_custom_call.1} parent=1 // loop_pre_header
      _
    $region3: #{tpu_custom_call.1} parent=1 // loop_header
      %s15 = sphi 0, %s19
      %p16 = scmp.ge.s32.totalorder %s15, 4
      %s25 = sphi 0, %s27
      %s28 = sphi 0, %s25
      %s29 = sphi 0, %s28
      %s45 = sphi 0, %s29
      %s51 = sphi 0, %s53
      %s54 = sphi 0, %s51
      %s55 = sphi 0, %s54
      %s71 = sphi 0, %s55
      %s75 = sphi 0, %s75
      %s77 = sphi 0, %s75
      %s78 = sphi 0, %s77
      %s92 = sphi 0, %s78
      %s96 = sphi 0, %s96
      %s98 = sphi 0, %s96
      %s99 = sphi 0, %s98
      %s113 = sphi 0, %s99
      %s117 = sphi 0, %s117
      %s119 = sphi 0, %s117
      %s120 = sphi 0, %s119
      %s134 = sphi 0, %s120
      %s140 = sphi 0, %s142
      %s143 = sphi 0, %s140
      %s144 = sphi 0, %s143
      %s160 = sphi 0, %s144
    $region4: #{tpu_custom_call.1} parent=1 // loop_header_branch
      %18 = sbr.rel (%p16) target = $region8
    $region5: #{tpu_custom_call.1} parent=1 // loop_body
      %s20 = ssub.s32 %s15, 1
      %s21 = ssub.s32 %s15, 2
      %s22 = sadd.s32 %s15, 1
      %s23 = ssub.s32 %s15, %s22
      %p24 = scmp.eq.s32.totalorder %s23, 0
      %s26 = sadd.s32 %s25, 1
      %s27 = scalar_select %p24, %s25, %s26
      %p30 = pneg %p24
      %p31 = scmp.eq.s32.totalorder %s15, 1
      %p32 = por %p30, %p31
      %p33 = scmp.ne.s32.totalorder %s25, %s28
      %p34 = scmp.eq.s32.totalorder %s15, 0
      %p35 = por %p33, %p34
      %p36 = scmp.ne.s32.totalorder %s25, %s28
      %p37 = scmp.eq.s32.totalorder %s20, 1
      %p38 = por %p36, %p37
      %p39 = scmp.ne.s32.totalorder %s28, %s29
      %p40 = scmp.eq.s32.totalorder %s20, 0
      %p41 = por %p39, %p40
      %p42 = scmp.ne.s32.totalorder %s28, %s29
      %p43 = scmp.eq.s32.totalorder %s21, 1
      %p44 = por %p42, %p43
      %p46 = scmp.ne.s32.totalorder %s29, %s45
      %p47 = scmp.eq.s32.totalorder %s21, 0
      %p48 = por %p46, %p47
      %s49 = ssub.s32 %s15, %s22
      %p50 = scmp.eq.s32.totalorder %s49, 0
      %s52 = sadd.s32 %s51, 1
      %s53 = scalar_select %p50, %s51, %s52
      %p56 = pneg %p50
      %p57 = scmp.eq.s32.totalorder %s15, 1
      %p58 = por %p56, %p57
      %p59 = scmp.ne.s32.totalorder %s51, %s54
      %p60 = scmp.eq.s32.totalorder %s15, 0
      %p61 = por %p59, %p60
      %p62 = scmp.ne.s32.totalorder %s51, %s54
      %p63 = scmp.eq.s32.totalorder %s20, 1
      %p64 = por %p62, %p63
      %p65 = scmp.ne.s32.totalorder %s54, %s55
      %p66 = scmp.eq.s32.totalorder %s20, 0
      %p67 = por %p65, %p66
      %p68 = scmp.ne.s32.totalorder %s54, %s55
      %p69 = scmp.eq.s32.totalorder %s21, 1
      %p70 = por %p68, %p69
      %p72 = scmp.ne.s32.totalorder %s55, %s71
      %p73 = scmp.eq.s32.totalorder %s21, 0
      %p74 = por %p72, %p73
      %s76 = sadd.s32 %s75, 1
      %p79 = scmp.eq.s32.totalorder %s15, 1
      %p80 = scmp.ne.s32.totalorder %s75, %s77
      %p81 = scmp.eq.s32.totalorder %s15, 0
      %p82 = por %p80, %p81
      %p83 = scmp.ne.s32.totalorder %s75, %s77
      %p84 = scmp.eq.s32.totalorder %s20, 1
      %p85 = por %p83, %p84
      %p86 = scmp.ne.s32.totalorder %s77, %s78
      %p87 = scmp.eq.s32.totalorder %s20, 0
      %p88 = por %p86, %p87
      %p89 = scmp.ne.s32.totalorder %s77, %s78
      %p90 = scmp.eq.s32.totalorder %s21, 1
      %p91 = por %p89, %p90
      %p93 = scmp.ne.s32.totalorder %s78, %s92
      %p94 = scmp.eq.s32.totalorder %s21, 0
      %p95 = por %p93, %p94
      %s97 = sadd.s32 %s96, 1
      %p100 = scmp.eq.s32.totalorder %s15, 1
      %p101 = scmp.ne.s32.totalorder %s96, %s98
      %p102 = scmp.eq.s32.totalorder %s15, 0
      %p103 = por %p101, %p102
      %p104 = scmp.ne.s32.totalorder %s96, %s98
      %p105 = scmp.eq.s32.totalorder %s20, 1
      %p106 = por %p104, %p105
      %p107 = scmp.ne.s32.totalorder %s98, %s99
      %p108 = scmp.eq.s32.totalorder %s20, 0
      %p109 = por %p107, %p108
      %p110 = scmp.ne.s32.totalorder %s98, %s99
      %p111 = scmp.eq.s32.totalorder %s21, 1
      %p112 = por %p110, %p111
      %p114 = scmp.ne.s32.totalorder %s99, %s113
      %p115 = scmp.eq.s32.totalorder %s21, 0
      %p116 = por %p114, %p115
      %s118 = sadd.s32 %s117, 1
      %p121 = scmp.eq.s32.totalorder %s15, 1
      %p122 = scmp.ne.s32.totalorder %s117, %s119
      %p123 = scmp.eq.s32.totalorder %s15, 0
      %p124 = por %p122, %p123
      %p125 = scmp.ne.s32.totalorder %s117, %s119
      %p126 = scmp.eq.s32.totalorder %s20, 1
      %p127 = por %p125, %p126
      %p128 = scmp.ne.s32.totalorder %s119, %s120
      %p129 = scmp.eq.s32.totalorder %s20, 0
      %p130 = por %p128, %p129
      %p131 = scmp.ne.s32.totalorder %s119, %s120
      %p132 = scmp.eq.s32.totalorder %s21, 1
      %p133 = por %p131, %p132
      %p135 = scmp.ne.s32.totalorder %s120, %s134
      %p136 = scmp.eq.s32.totalorder %s21, 0
      %p137 = por %p135, %p136
      %s138 = ssub.s32 %s15, %s22
      %p139 = scmp.eq.s32.totalorder %s138, 0
      %s141 = sadd.s32 %s140, 1
      %s142 = scalar_select %p139, %s140, %s141
      %p145 = pneg %p139
      %p146 = scmp.eq.s32.totalorder %s15, 1
      %p147 = por %p145, %p146
      %p148 = scmp.ne.s32.totalorder %s140, %s143
      %p149 = scmp.eq.s32.totalorder %s15, 0
      %p150 = por %p148, %p149
      %p151 = scmp.ne.s32.totalorder %s140, %s143
      %p152 = scmp.eq.s32.totalorder %s20, 1
      %p153 = por %p151, %p152
      %p154 = scmp.ne.s32.totalorder %s143, %s144
      %p155 = scmp.eq.s32.totalorder %s20, 0
      %p156 = por %p154, %p155
      %p157 = scmp.ne.s32.totalorder %s143, %s144
      %p158 = scmp.eq.s32.totalorder %s21, 1
      %p159 = por %p157, %p158
      %p161 = scmp.ne.s32.totalorder %s144, %s160
      %p162 = scmp.eq.s32.totalorder %s21, 0
      %p163 = por %p161, %p162
      %p164 = scmp.le.s32.totalorder 1, %s15
      %p165 = scmp.lt.s32.totalorder %s15, 3
      %p166 = pnand %p164, %p165
      %p167 = pneg %p166
      // Predicated region
      $region9: #{tpu_custom_call.1} parent=5 // pred_check
        _
      $region10: #{tpu_custom_call.1} parent=5 // pred_check_branch
        %169 = sbr.rel (%p166) target = $region12
      $region11: #{tpu_custom_call.1} parent=5 // pred_region
        %s170 = ssub.s32 %s15, 1
        // Predicated region
        $region13: #{tpu_custom_call.1} parent=11 // pred_check
          %p171 = pneg %p88
        $region14: #{tpu_custom_call.1} parent=11 // pred_check_branch
          %173 = sbr.rel (%p171) target = $region16
        $region15: #{tpu_custom_call.1} parent=11 // pred_region
          %s175 = ssub.s32 2048, 2048
          %176 = vsyncadd [#allocation3], %s175
          %s177 = sshll.u32 [#allocation2], 4
          %s178 = int_to_ptr.vmem [resolvable:$true] %s177
          %183 = dma.hbm_to_vmem [thread:$0]  %s2, 2048, %s178, [#allocation3], 128, 128, 8
        $region16: #{tpu_custom_call.1} parent=11 // pred_fallthru
          _
        // Predicated region
        $region17: #{tpu_custom_call.1} parent=11 // pred_check
          %p184 = pneg %p109
        $region18: #{tpu_custom_call.1} parent=11 // pred_check_branch
          %186 = sbr.rel (%p184) target = $region20
        $region19: #{tpu_custom_call.1} parent=11 // pred_region
          _
        $region20: #{tpu_custom_call.1} parent=11 // pred_fallthru
          _
        // Predicated region
        $region21: #{tpu_custom_call.1} parent=11 // pred_check
          %p187 = pneg %p130
        $region22: #{tpu_custom_call.1} parent=11 // pred_check_branch
          %189 = sbr.rel (%p187) target = $region24
        $region23: #{tpu_custom_call.1} parent=11 // pred_region
          _
        $region24: #{tpu_custom_call.1} parent=11 // pred_fallthru
          _
      $region12: #{tpu_custom_call.1} parent=5 // pred_fallthru
        _
      %p190 = scmp.lt.s32.totalorder %s15, 2
      // Predicated region
      $region25: #{tpu_custom_call.1} parent=5 // pred_check
        %p191 = pneg %p190
      $region26: #{tpu_custom_call.1} parent=5 // pred_check_branch
        %193 = sbr.rel (%p191) target = $region28
      $region27: #{tpu_custom_call.1} parent=5 // pred_region
        // Predicated region
        $region29: #{tpu_custom_call.1} parent=27 // pred_check
          %p194 = pneg %p35
        $region30: #{tpu_custom_call.1} parent=27 // pred_check_branch
          %196 = sbr.rel (%p194) target = $region32
        $region31: #{tpu_custom_call.1} parent=27 // pred_region
          %s197 = smul.u32 2, %s15
          %p198 = scmp.lt.s32.totalorder %s197, 3
          %s199 = scalar_select %p198, %s197, 3
          %s200 = smul.addr %s199, 8
          %s201 = scalar_lea.vmem %s0, %s200
          %s202 = smul.u32 2, %s15
        $region32: #{tpu_custom_call.1} parent=27 // pred_fallthru
          _
        // Predicated region
        $region33: #{tpu_custom_call.1} parent=27 // pred_check
          %p203 = pneg %p61
        $region34: #{tpu_custom_call.1} parent=27 // pred_check_branch
          %205 = sbr.rel (%p203) target = $region36
        $region35: #{tpu_custom_call.1} parent=27 // pred_region
          %s206 = smul.u32 2, %s15
          %p207 = scmp.lt.s32.totalorder %s206, 3
          %s208 = scalar_select %p207, %s206, 3
          %s209 = smul.addr %s208, 8
          %s210 = scalar_lea.vmem %s1, %s209
          %s211 = smul.u32 2, %s15
        $region36: #{tpu_custom_call.1} parent=27 // pred_fallthru
          _
      $region28: #{tpu_custom_call.1} parent=5 // pred_fallthru
        _
      %p212 = scmp.le.s32.totalorder 1, %s15
      %p213 = scmp.lt.s32.totalorder %s15, 3
      %p214 = pnand %p212, %p213
      %p215 = pneg %p214
      // Predicated region
      $region37: #{tpu_custom_call.1} parent=5 // pred_check
        _
      $region38: #{tpu_custom_call.1} parent=5 // pred_check_branch
        %217 = sbr.rel (%p214) target = $region40
      $region39: #{tpu_custom_call.1} parent=5 // pred_region
        %s218 = ssub.s32 %s15, 1
        // Predicated region
        $region41: #{tpu_custom_call.1} parent=39 // pred_check
          %p219 = pneg %p88
        $region42: #{tpu_custom_call.1} parent=39 // pred_check_branch
          %221 = sbr.rel (%p219) target = $region44
        $region43: #{tpu_custom_call.1} parent=39 // pred_region
          %222 = dma.done [#allocation3], 2048
        $region44: #{tpu_custom_call.1} parent=39 // pred_fallthru
          _
        %s223 = smul.u32 2, %s20
        %p224 = scmp.lt.s32.totalorder %s223, 3
        %s225 = scalar_select %p224, %s223, 3
        %s226 = smul.addr %s225, 8
        %s227 = scalar_lea.vmem %s0, %s226
        %p228 = pneg %p41
        %p229 = pneg %p38
        %s230 = smul.u32 2, %s20
        %p231 = scmp.lt.s32.totalorder %s230, 3
        %s232 = scalar_select %p231, %s230, 3
        %s233 = smul.addr %s232, 8
        %s234 = scalar_lea.vmem %s1, %s233
        %p235 = pneg %p67
        %p236 = pneg %p64
        %p237 = pneg %p88
        %p238 = pneg %p85
        %p239 = pneg %p109
        %p240 = pneg %p106
        %p241 = pneg %p130
        %p242 = pneg %p127
        %p243 = pneg %p156
        %p244 = pneg %p153
        %s245 = sand.u32 %s143, 1
        %s246 = scalar_lea.sflag [#allocation4], %s245
        %s247 = sand.u32 %s143, 1
        %s248 = smul.addr %s247, 16
        %s249 = scalar_lea.vmem [#allocation5], %s248
        %s250 = smul.u32 2, %s20
        %p251 = scmp.lt.s32.totalorder %s250, 3
        %s252 = scalar_select %p251, %s250, 3
        %s253 = smul.addr %s252, 8
        %s254 = scalar_lea.vmem %s0, %s253
        %s255 = smul.u32 2, %s20
        %s256 = smul.u32 2, %s20
        %p257 = scmp.lt.s32.totalorder %s256, 3
        %s258 = scalar_select %p257, %s256, 3
        %s259 = smul.addr %s258, 8
        %s260 = scalar_lea.vmem %s1, %s259
        %s261 = smul.u32 2, %s20
        %s262 = smul.u32 2, %s20
        %v263 = vld [vmem:[%s254] sm:$0xff]
        %v264 = vld [vmem:[%s254 + $0x8] sm:$0xff]
        %v265 = vlaneseq
        %v266 = vand.u32 %v265, 127
        %267 = vset.pattern.permute.xlu0 0
        %268 = vperm.xlu0 %267, %v263
        %v269 = vpop.permute.xlu0 %268
        %270 = vset.pattern.permute.xlu0 0
        %271 = vperm.xlu0 %270, %v264
        %v272 = vpop.permute.xlu0 %271
        %vm273 = vcmp.eq.s32.totalorder %v266, %v269
        %vm274 = vcmp.eq.s32.totalorder %v266, %v272
        %v275 = vsel %vm273, 1, 0
        %v276 = vsel %vm274, 1, 0
        %v277 = vcvt.s32.f32 %v275
        %v278 = vcvt.s32.f32 %v276
        %v279 = vadd.f32 %v277, 0.0
        %v280 = vadd.f32 %v278, 0.0
        %v281 = vadd.s32 %v263, 5
        %v282 = vadd.s32 %v264, 5
        %283 = vset.pattern.permute.xlu0 1
        %284 = vperm.xlu0 %283, %v281
        %v285 = vpop.permute.xlu0 %284
        %286 = vset.pattern.permute.xlu0 1
        %287 = vperm.xlu0 %286, %v282
        %v288 = vpop.permute.xlu0 %287
        %vm289 = vcmp.eq.s32.totalorder %v266, %v285
        %vm290 = vcmp.eq.s32.totalorder %v266, %v288
        %v291 = vsel %vm289, 1, 0
        %v292 = vsel %vm290, 1, 0
        %v293 = vcvt.s32.f32 %v291
        %v294 = vcvt.s32.f32 %v292
        %v295 = vadd.f32 %v279, %v293
        %v296 = vadd.f32 %v280, %v294
        %v297 = vadd.s32 %v263, 10
        %v298 = vadd.s32 %v264, 10
        %299 = vset.pattern.permute.xlu0 2
        %300 = vperm.xlu0 %299, %v297
        %v301 = vpop.permute.xlu0 %300
        %302 = vset.pattern.permute.xlu0 2
        %303 = vperm.xlu0 %302, %v298
        %v304 = vpop.permute.xlu0 %303
        %vm305 = vcmp.eq.s32.totalorder %v266, %v301
        %vm306 = vcmp.eq.s32.totalorder %v266, %v304
        %v307 = vsel %vm305, 1, 0
        %v308 = vsel %vm306, 1, 0
        %v309 = vcvt.s32.f32 %v307
        %v310 = vcvt.s32.f32 %v308
        %v311 = vadd.f32 %v295, %v309
        %v312 = vadd.f32 %v296, %v310
        %v313 = vld [vmem:[#allocation2] sm:$0xff]
        %v314 = vld [vmem:[#allocation2 + $0x8] sm:$0xff]
        %v315 = vld [vmem:[#allocation2 + $0x10] sm:$0xff]
        %v316 = vld [vmem:[#allocation2 + $0x18] sm:$0xff]
        %v317 = vld [vmem:[#allocation2 + $0x20] sm:$0xff]
        %v318 = vld [vmem:[#allocation2 + $0x28] sm:$0xff]
        %v319 = vld [vmem:[#allocation2 + $0x30] sm:$0xff]
        %v320 = vld [vmem:[#allocation2 + $0x38] sm:$0xff]
        %v321 = vld [vmem:[#allocation2 + $0x40] sm:$0xff]
        %v322 = vld [vmem:[#allocation2 + $0x48] sm:$0xff]
        %v323 = vld [vmem:[#allocation2 + $0x50] sm:$0xff]
        %v324 = vld [vmem:[#allocation2 + $0x58] sm:$0xff]
        %v325 = vld [vmem:[#allocation2 + $0x60] sm:$0xff]
        %v326 = vld [vmem:[#allocation2 + $0x68] sm:$0xff]
        %v327 = vld [vmem:[#allocation2 + $0x70] sm:$0xff]
        %v328 = vld [vmem:[#allocation2 + $0x78] sm:$0xff]
        %v329 = vld [vmem:[%s260] sm:$0xff]
        %v330 = vld [vmem:[%s260 + $0x8] sm:$0xff]
        %v331 = vld [vmem:[%s3] sm:$0x7]
        %vm332 = vcmask 23552
        %v334 = vsel %vm332, %v329, 0
        %v337 = vsel %vm332, %v330, 0
        %vm339 = vcmask 1042432
        %v341 = vsel %vm339, %v331, 0
        %343 = vmatprep.subr.mxu0 0.0
        %344 = vmatpush1.msra.mxu0 %v341
        %345 = vmatprep.subr.mxu0 0.0
        %346 = vmatpush1.msra.mxu0 0.0
        %347 = vmatprep.subr.mxu0 0.0
        %348 = vmatpush1.msra.mxu0 0.0
        %349 = vmatprep.subr.mxu0 0.0
        %350 = vmatpush1.msra.mxu0 0.0
        %351 = vmatprep.subr.mxu0 0.0
        %352 = vmatpush1.msra.mxu0 0.0
        %353 = vmatprep.subr.mxu0 0.0
        %354 = vmatpush1.msra.mxu0 0.0
        %355 = vmatprep.subr.mxu0 0.0
        %356 = vmatpush1.msra.mxu0 0.0
        %357 = vmatprep.subr.mxu0 0.0
        %358 = vmatpush1.msra.mxu0 0.0
        %359 = vmatprep.subr.mxu0 0.0
        %360 = vmatpush1.msra.mxu0 0.0
        %361 = vmatprep.subr.mxu0 0.0
        %362 = vmatpush1.msra.mxu0 0.0
        %363 = vmatprep.subr.mxu0 0.0
        %364 = vmatpush1.msra.mxu0 0.0
        %365 = vmatprep.subr.mxu0 0.0
        %366 = vmatpush1.msra.mxu0 0.0
        %367 = vmatprep.subr.mxu0 0.0
        %368 = vmatpush1.msra.mxu0 0.0
        %369 = vmatprep.subr.mxu0 0.0
        %370 = vmatpush1.msra.mxu0 0.0
        %371 = vmatprep.subr.mxu0 0.0
        %372 = vmatpush1.msra.mxu0 0.0
        %373 = vmatprep.subr.mxu0 0.0
        %374 = vmatpush1.msra.mxu0 0.0
        %375 = vmatprep.subr.mxu0 0.0
        %376 = vmatpush1.msra.mxu0 0.0
        %377 = vmatprep.subr.mxu0 0.0
        %378 = vmatpush1.msra.mxu0 0.0
        %379 = vmatprep.subr.mxu0 0.0
        %380 = vmatpush1.msra.mxu0 0.0
        %381 = vmatprep.subr.mxu0 0.0
        %382 = vmatpush1.msra.mxu0 0.0
        %383 = vmatprep.subr.mxu0 0.0
        %384 = vmatpush1.msra.mxu0 0.0
        %385 = vmatprep.subr.mxu0 0.0
        %386 = vmatpush1.msra.mxu0 0.0
        %387 = vmatprep.subr.mxu0 0.0
        %388 = vmatpush1.msra.mxu0 0.0
        %389 = vmatprep.subr.mxu0 0.0
        %390 = vmatpush1.msra.mxu0 0.0
        %391 = vmatprep.subr.mxu0 0.0
        %392 = vmatpush1.msra.mxu0 0.0
        %393 = vmatprep.subr.mxu0 0.0
        %394 = vmatpush1.msra.mxu0 0.0
        %395 = vmatprep.subr.mxu0 0.0
        %396 = vmatpush1.msra.mxu0 0.0
        %397 = vmatprep.subr.mxu0 0.0
        %398 = vmatpush1.msra.mxu0 0.0
        %399 = vmatprep.subr.mxu0 0.0
        %400 = vmatpush1.msra.mxu0 0.0
        %401 = vmatprep.subr.mxu0 0.0
        %402 = vmatpush1.msra.mxu0 0.0
        %403 = vmatprep.subr.mxu0 0.0
        %404 = vmatpush1.msra.mxu0 0.0
        %405 = vmatprep.subr.mxu0 0.0
        %406 = vmatpush1.msra.mxu0 0.0
        %407 = vmatprep.mubr.f32.mxu0 0.0
        %408 = vmatmul.mubr.f32.gmra.mrb[0].mxu0 %v334
        %v409 = vpop.f32.mrb[0].mxu0
        %v410 = vadd.f32 0.0, %v409
        %v411 = vpop.f32.mrb[0].mxu0
        %412 = vmatprep.mubr.f32.mxu0 0.0
        %413 = vmatmul.mubr.f32.gmra.mrb[0].mxu0 %v337
        %v414 = vpop.f32.mrb[0].mxu0
        %v415 = vadd.f32 0.0, %v414
        %v416 = vpop.f32.mrb[0].mxu0
        %417 = vdwg.mxu0
        %418 = vmatprep.subr.mxu0 0.0
        %419 = vmatpush1.msra.mxu0 %v313
        %420 = vmatprep.subr.mxu0 0.0
        %421 = vmatpush1.msra.mxu0 %v314
        %422 = vmatprep.subr.mxu0 0.0
        %423 = vmatpush1.msra.mxu0 %v315
        %424 = vmatprep.subr.mxu0 0.0
        %425 = vmatpush1.msra.mxu0 %v316
        %426 = vmatprep.subr.mxu0 0.0
        %427 = vmatpush1.msra.mxu0 %v317
        %428 = vmatprep.subr.mxu0 0.0
        %429 = vmatpush1.msra.mxu0 %v318
        %430 = vmatprep.subr.mxu0 0.0
        %431 = vmatpush1.msra.mxu0 %v319
        %432 = vmatprep.subr.mxu0 0.0
        %433 = vmatpush1.msra.mxu0 %v320
        %434 = vmatprep.subr.mxu0 0.0
        %435 = vmatpush1.msra.mxu0 %v321
        %436 = vmatprep.subr.mxu0 0.0
        %437 = vmatpush1.msra.mxu0 %v322
        %438 = vmatprep.subr.mxu0 0.0
        %439 = vmatpush1.msra.mxu0 %v323
        %440 = vmatprep.subr.mxu0 0.0
        %441 = vmatpush1.msra.mxu0 %v324
        %442 = vmatprep.subr.mxu0 0.0
        %443 = vmatpush1.msra.mxu0 %v325
        %444 = vmatprep.subr.mxu0 0.0
        %445 = vmatpush1.msra.mxu0 %v326
        %446 = vmatprep.subr.mxu0 0.0
        %447 = vmatpush1.msra.mxu0 %v327
        %448 = vmatprep.subr.mxu0 0.0
        %449 = vmatpush1.msra.mxu0 %v328
        %450 = vmatprep.subr.mxu0 0.0
        %451 = vmatpush1.msra.mxu0 0.0
        %452 = vmatprep.subr.mxu0 0.0
        %453 = vmatpush1.msra.mxu0 0.0
        %454 = vmatprep.subr.mxu0 0.0
        %455 = vmatpush1.msra.mxu0 0.0
        %456 = vmatprep.subr.mxu0 0.0
        %457 = vmatpush1.msra.mxu0 0.0
        %458 = vmatprep.subr.mxu0 0.0
        %459 = vmatpush1.msra.mxu0 0.0
        %460 = vmatprep.subr.mxu0 0.0
        %461 = vmatpush1.msra.mxu0 0.0
        %462 = vmatprep.subr.mxu0 0.0
        %463 = vmatpush1.msra.mxu0 0.0
        %464 = vmatprep.subr.mxu0 0.0
        %465 = vmatpush1.msra.mxu0 0.0
        %466 = vmatprep.subr.mxu0 0.0
        %467 = vmatpush1.msra.mxu0 0.0
        %468 = vmatprep.subr.mxu0 0.0
        %469 = vmatpush1.msra.mxu0 0.0
        %470 = vmatprep.subr.mxu0 0.0
        %471 = vmatpush1.msra.mxu0 0.0
        %472 = vmatprep.subr.mxu0 0.0
        %473 = vmatpush1.msra.mxu0 0.0
        %474 = vmatprep.subr.mxu0 0.0
        %475 = vmatpush1.msra.mxu0 0.0
        %476 = vmatprep.subr.mxu0 0.0
        %477 = vmatpush1.msra.mxu0 0.0
        %478 = vmatprep.subr.mxu0 0.0
        %479 = vmatpush1.msra.mxu0 0.0
        %480 = vmatprep.subr.mxu0 0.0
        %481 = vmatpush1.msra.mxu0 0.0
        %482 = vmatprep.mubr.f32.mxu0 0.0
        %483 = vmatmul.mubr.f32.gmra.mrb[0].mxu0 %v311
        %v484 = vpop.f32.mrb[0].mxu0
        %v485 = vadd.f32 %v410, %v484
        %v486 = vpop.f32.mrb[0].mxu0
        %487 = vmatprep.mubr.f32.mxu0 0.0
        %488 = vmatmul.mubr.f32.gmra.mrb[0].mxu0 %v312
        %v489 = vpop.f32.mrb[0].mxu0
        %v490 = vadd.f32 %v415, %v489
        %v491 = vpop.f32.mrb[0].mxu0
        %492 = vdwg.mxu0
        %v493 = vld [vmem:[%s4] sm:$0x1]
        %v495 = vlaneseq
        %v496 = vshrl.u32 %v495, 7
        %v497 = vsub.s32 0, %v496
        %v498 = vrot.slane %v493, %v497
        %v500 = vadd.f32 %v485, %v498
        %v501 = vadd.f32 %v490, %v498
        %502 = vst [vmem:[%s249] sm:$0xff] %v500
        %503 = vst [vmem:[%s249 + $0x8] sm:$0xff] %v501
        %s504 = sand.u32 %s143, 1
        %s505 = scalar_lea.sflag [#allocation4], %s504
        %s506 = sand.u32 %s143, 1
        %s507 = smul.addr %s506, 16
        %s508 = scalar_lea.vmem [#allocation5], %s507
        // Predicated region
        $region45: #{tpu_custom_call.1} parent=39 // pred_check
          %p509 = pneg %p153
        $region46: #{tpu_custom_call.1} parent=39 // pred_check_branch
          %511 = sbr.rel (%p509) target = $region48
        $region47: #{tpu_custom_call.1} parent=39 // pred_region
          %s512 = smul.u32 2, %s20
          %s514 = ssub.s32 256, 256
          %515 = vsyncadd %s505, %s514
          %s516 = smul.addr %s512, 128
          %s517 = scalar_lea.hbm %s5, %s516
          %s518 = sshll.u32 %s508, 4
          %s519 = int_to_ptr.vmem [resolvable:$true] %s518
          %524 = dma.vmem_to_hbm [thread:$0]  %s519, 256, %s517, %s505, 128, 128, 8
        $region48: #{tpu_custom_call.1} parent=39 // pred_fallthru
          _
      $region40: #{tpu_custom_call.1} parent=5 // pred_fallthru
        _
      %p525 = scmp.le.s32.totalorder 2, %s15
      // Predicated region
      $region49: #{tpu_custom_call.1} parent=5 // pred_check
        %p526 = pneg %p525
      $region50: #{tpu_custom_call.1} parent=5 // pred_check_branch
        %528 = sbr.rel (%p526) target = $region52
      $region51: #{tpu_custom_call.1} parent=5 // pred_region
        %s529 = ssub.s32 %s15, 2
        // Predicated region
        $region53: #{tpu_custom_call.1} parent=51 // pred_check
          %p530 = pneg %p159
        $region54: #{tpu_custom_call.1} parent=51 // pred_check_branch
          %532 = sbr.rel (%p530) target = $region56
        $region55: #{tpu_custom_call.1} parent=51 // pred_region
          %s533 = sand.u32 %s144, 1
          %s534 = scalar_lea.sflag [#allocation4], %s533
          %s535 = sand.u32 %s144, 1
          %s536 = smul.addr %s535, 16
          %s537 = scalar_lea.vmem [#allocation5], %s536
          %538 = dma.done %s534, 256
        $region56: #{tpu_custom_call.1} parent=51 // pred_fallthru
          _
      $region52: #{tpu_custom_call.1} parent=5 // pred_fallthru
        _
    $region6: #{tpu_custom_call.1} parent=1 // loop_footer
      %s19 = sadd.s32 1, %s15
    $region7: #{tpu_custom_call.1} parent=1 // loop_footer_branch
      %14 = sbr.rel target = $region3
    $region8: #{tpu_custom_call.1} parent=1 // loop_exit
      _
    %539 = vsyncpa [#allocation3], 1
    %s540 = scalar_lea.sflag [#allocation3], 1
    %541 = vsyncpa %s540, 1
    %542 = vsyncpa [#allocation4], 1
    %s543 = scalar_lea.sflag [#allocation4], 1
    %544 = vsyncpa %s543, 1

</llo_original>
